<compile_context>
chip_gen: v5e
topology: v5e:2x2
jax: 0.10.0
libtpu: 0.0.40
codegen_flags: <defaults>
</compile_context>

<pallas_src>
import functools
import math

import jax
import jax.numpy as jnp
from jax.experimental import pallas as pl
from jax.experimental.pallas import tpu as pltpu

_LANES = 128
_SUB_BF16 = 16  # native bf16 vreg is (16, 128): keep bm a multiple of 16


def _round_up(x, m):
    return ((x + m - 1) // m) * m


def _cdiv(a, b):
    return -(-a // b)


# ----------------------------------------------------------------------------
# Kernel
# ----------------------------------------------------------------------------
def etanet_kernel(x_ref, w1_ref, b1_ref, w2_ref, bias_ref, o_ref, acc_ref):
    """Grid = (batch blocks, H panels). H axis is the innermost reduction."""
    k = pl.program_id(1)

    @pl.when(k == 0)
    def _():
        acc_ref[...] = jnp.zeros_like(acc_ref)

    # fc1 panel: bf16 operands on the MXU, f32 accumulation; bias + ReLU on VPU.
    h = jnp.dot(x_ref[...], w1_ref[...], preferred_element_type=jnp.float32)
    h = jnp.maximum(h + b1_ref[...], 0.0)

    # fc2 panel contribution, accumulated in f32 (exact across H panels since
    # each hidden unit's ReLU only depends on its own w1 column / b1 entry).
    acc_ref[...] += jnp.dot(h.astype(jnp.bfloat16), w2_ref[...],
                            preferred_element_type=jnp.float32)

    @pl.when(k == pl.num_programs(1) - 1)
    def _():
        y = acc_ref[...] + bias_ref[...]
        # Exact sigmoid: exp goes to the EUP slot, exact f32 divide.
        o_ref[...] = (1.0 / (1.0 + jnp.exp(-y))).astype(o_ref.dtype)


# ----------------------------------------------------------------------------
# VMEM budgeting
# ----------------------------------------------------------------------------
def _vmem_budget_bytes():
    phys = 64 * 1024 * 1024  # conservative fallback == v7x per-TC physical VMEM
    try:
        info = pltpu.get_tpu_info()
        phys = int(getattr(info, "vmem_capacity_bytes", phys))
    except Exception:
        pass
    return int(phys * 0.85)  # ~15% headroom for compiler-internal scratch


def _vmem_footprint(bm, d_in_p, th, d_out_p, n_h):
    """Approximate VMEM bytes for one grid step with the chosen tiling."""
    wbuf = 1 if n_h == 1 else 2            # resident weights vs. streamed panels
    f = 0
    f += 2 * bm * d_in_p * 2               # x tile (bf16), double-buffered
    f += wbuf * d_in_p * th * 2            # w1 panel (bf16)
    f += wbuf * th * 4                     # b1 panel (f32)
    f += wbuf * th * d_out_p * 2           # w2 panel (bf16)
    f += 1 * d_out_p * 4                   # fused bias (f32), single buffer
    f += 2 * bm * d_out_p * 4              # out tile (f32), double-buffered
    f += bm * d_out_p * 4                  # f32 accumulator scratch
    f += bm * th * (4 + 2)                 # h intermediate (f32 + bf16 cast)
    return f


# ----------------------------------------------------------------------------
# One-time parameter preparation (pad + cast, hoisted out of the forward path)
# ----------------------------------------------------------------------------
def prepare_params(w1, b1, w2, b2, b_baseline, *, bm_max=512):
    """Returns ((w1_bf, b1_f32, w2_bf, bias_f32), th) with lane-aligned padding.

    All padding is mathematically a no-op: padded x columns hit zero w1 rows,
    padded hidden units get zero weight + zero bias (ReLU(0)=0) and zero w2
    rows, padded output columns are sliced off by the caller.
    """
    D_in, H = w1.shape
    D_out = w2.shape[1]
    D_in_p = _round_up(D_in, _LANES)
    D_out_p = _round_up(D_out, _LANES)

    # Choose the H panel size: fewest panels whose footprint fits the budget.
    budget = _vmem_budget_bytes()
    H_p = _round_up(H, _LANES)
    n_h = 1
    while True:
        th = _round_up(_cdiv(H_p, n_h), _LANES)
        if _vmem_footprint(bm_max, D_in_p, th, D_out_p, n_h) <= budget or th == _LANES:
            break
        n_h += 1
    H_pad = _round_up(H_p, th)

    # fc_baseline(zeros) == its bias -> fold with the fc2 bias once, on host.
    bias = (b2 + b_baseline).astype(jnp.float32)                     # (1, D_out)

    w1_bf = jnp.pad(w1, ((0, D_in_p - D_in), (0, H_pad - H))).astype(jnp.bfloat16)
    b1_f32 = jnp.pad(b1.astype(jnp.float32), ((0, 0), (0, H_pad - H)))
    w2_bf = jnp.pad(w2, ((0, H_pad - H), (0, D_out_p - D_out))).astype(jnp.bfloat16)
    bias_f32 = jnp.pad(bias, ((0, 0), (0, D_out_p - D_out)))

    return (w1_bf, b1_f32, w2_bf, bias_f32), th


# ----------------------------------------------------------------------------
# Forward (jit-friendly: all shape logic is static Python on array shapes)
# ----------------------------------------------------------------------------
def etanet_forward(x, w1_bf, b1_f32, w2_bf, bias_f32, *, d_out, th,
                   bm_max=512, num_cores=1, vmem_limit_bytes=None):
    """EtaNet forward on prepared (padded, bf16) parameters.

    num_cores: 1 for v5e/v6e (single TensorCore); 2 on v7x to shard the batch
    grid axis across both TensorCores (only when each block can be >= 128 rows).
    """
    B, D_in = x.shape
    D_in_p, H_pad = w1_bf.shape
    D_out_p = w2_bf.shape[1]
    n_h = H_pad // th

    # --- batch tiling: big blocks, no artificial splitting on single-TC chips.
    B_pad0 = _round_up(B, _SUB_BF16)
    n_b = _cdiv(B_pad0, bm_max)
    if num_cores > 1 and B_pad0 >= num_cores * _LANES:
        n_b = max(n_b, num_cores)
    if n_b == 1:
        bm = B_pad0
    else:
        bm = _round_up(_cdiv(B_pad0, n_b), _LANES)
    B_pad = _round_up(B_pad0, bm)

    x_bf = x.astype(jnp.bfloat16)
    if B_pad != B or D_in_p != D_in:
        x_bf = jnp.pad(x_bf, ((0, B_pad - B), (0, D_in_p - D_in)))

    grid = (B_pad // bm, n_h)

    if vmem_limit_bytes is None:
        need = _vmem_footprint(bm, D_in_p, th, D_out_p, n_h)
        vmem_limit_bytes = min(max(int(need * 1.3) + (4 << 20), 32 << 20),
                               _vmem_budget_bytes())
        vmem_limit_bytes = max(vmem_limit_bytes, need)

    # Grid-invariant blocks get a single VMEM buffer; streamed weight panels
    # keep the default double buffering.
    invariant = dict(pipeline_mode=pl.Buffered(1))
    w_mode = {} if n_h > 1 else dict(pipeline_mode=pl.Buffered(1))

    weight_bytes = (w1_bf.size * 2 + b1_f32.size * 4
                    + w2_bf.size * 2 + bias_f32.size * 4)
    cost = pl.CostEstimate(
        flops=2 * B_pad * (D_in_p * H_pad + H_pad * D_out_p),
        transcendentals=B_pad * D_out_p,
        bytes_accessed=int(B_pad * D_in_p * 2 + B_pad * D_out_p * 4
                           + weight_bytes * (grid[0] if n_h > 1 else 1)),
    )

    out_p = pl.pallas_call(
        etanet_kernel,
        out_shape=jax.ShapeDtypeStruct((B_pad, D_out_p), jnp.float32),
        grid_spec=pltpu.PrefetchScalarGridSpec(
            num_scalar_prefetch=0,
            grid=grid,
            in_specs=[
                pl.BlockSpec((bm, D_in_p), lambda i, k: (i, 0)),           # x tile
                pl.BlockSpec((D_in_p, th), lambda i, k: (0, k), **w_mode),  # w1 panel
                pl.BlockSpec((1, th), lambda i, k: (0, k), **w_mode),       # b1 panel
                pl.BlockSpec((th, D_out_p), lambda i, k: (k, 0), **w_mode), # w2 panel
                pl.BlockSpec((1, D_out_p), lambda i, k: (0, 0), **invariant),  # bias
            ],
            out_specs=pl.BlockSpec((bm, D_out_p), lambda i, k: (i, 0)),
            scratch_shapes=[pltpu.VMEM((bm, D_out_p), jnp.float32)],
        ),
        compiler_params=pltpu.CompilerParams(
            dimension_semantics=("parallel", "arbitrary"),
            vmem_limit_bytes=int(vmem_limit_bytes),
        ),
        cost_estimate=cost,
    )(x_bf, w1_bf, b1_f32, w2_bf, bias_f32)

    # Strip batch / lane padding (fuses with the consumer under jax.jit).
    return out_p[:B, :d_out]


# ----------------------------------------------------------------------------
# Reference + synthetic init mirroring the PyTorch module
# ----------------------------------------------------------------------------
def init_params(key, input_dim, output_dim):
    """fc1: Linear(D, 4D); fc2: Linear(4D, out);
    fc_baseline bias = inverse_sigmoid(Uniform(0.001, 0.999)).
    fc_baseline weight is irrelevant to forward (its input is all zeros)."""
    hidden = 4 * input_dim
    k1, k2, k3, k4, k5 = jax.random.split(key, 5)

    def linear_init(kw, kb, fan_in, fan_out):
        bound = 1.0 / math.sqrt(fan_in)
        w = jax.random.uniform(kw, (fan_in, fan_out), jnp.float32, -bound, bound)
        b = jax.random.uniform(kb, (1, fan_out), jnp.float32, -bound, bound)
        return w, b

    w1, b1 = linear_init(k1, k2, input_dim, hidden)
    w2, b2 = linear_init(k3, k4, hidden, output_dim)

    u = jax.random.uniform(k5, (1, output_dim), jnp.float32, 0.001, 0.999)
    b_baseline = jnp.log(1.0 / (1.0 - u) - 1.0)
    return w1, b1, w2, b2, b_baseline


def reference_forward(x, w1, b1, w2, b2, b_baseline):
    h = jnp.maximum(x @ w1 + b1, 0.0)
    return jax.nn.sigmoid(h @ w2 + b2 + b_baseline)


if __name__ == "__main__":
    B, input_dim, output_dim = 16, 32, 16   # small shapes; H = 4*input_dim = 128

    key = jax.random.PRNGKey(0)
    kx, kp = jax.random.split(key)
    x = jax.random.normal(kx, (B, input_dim), jnp.float32)
    w1, b1, w2, b2, b_baseline = init_params(kp, input_dim, output_dim)

    # Pad/cast the weights once; jit the per-call forward path.
    params, th = prepare_params(w1, b1, w2, b2, b_baseline)
    fwd = jax.jit(functools.partial(etanet_forward, d_out=output_dim, th=th))

    out = jax.block_until_ready(fwd(x, *params))

    ref = reference_forward(x, w1, b1, w2, b2, b_baseline)
    assert out.shape == (B, output_dim)
    # bf16 matmul operands (f32 accumulation, exact sigmoid) vs. f32 reference.
    assert jnp.allclose(out, ref, atol=1e-2, rtol=1e-2), (
        float(jnp.max(jnp.abs(out - ref))))

    print("KERNEL_OK")
</pallas_src>

<mosaic_0001>
module attributes {stable_mosaic.version = 11 : i64} {
  func.func @etanet_kernel(%arg0: i32, %arg1: i32, %arg2: memref<16x128xbf16, #tpu.memory_space<vmem>>, %arg3: memref<128x128xbf16, #tpu.memory_space<vmem>>, %arg4: memref<1x128xf32, #tpu.memory_space<vmem>>, %arg5: memref<128x128xbf16, #tpu.memory_space<vmem>>, %arg6: memref<1x128xf32, #tpu.memory_space<vmem>>, %arg7: memref<16x128xf32, #tpu.memory_space<vmem>>, %arg8: memref<16x128xf32, #tpu.memory_space<vmem>>) attributes {dimension_semantics = [#tpu.dimension_semantics<parallel>, #tpu.dimension_semantics<arbitrary>], iteration_bounds = array<i64: 1, 1>, scalar_prefetch = 0 : i64, scratch_operands = 1 : i64, tpu.core_type = #tpu.core_type<tc>, window_params = [{transform_indices = @transform_0, window_bounds = array<i64: 16, 128>}, {pipeline_mode = #tpu.pipeline_mode<synchronous>, transform_indices = @transform_1, window_bounds = array<i64: 128, 128>}, {pipeline_mode = #tpu.pipeline_mode<synchronous>, transform_indices = @transform_2, window_bounds = array<i64: 1, 128>}, {pipeline_mode = #tpu.pipeline_mode<synchronous>, transform_indices = @transform_3, window_bounds = array<i64: 128, 128>}, {pipeline_mode = #tpu.pipeline_mode<synchronous>, transform_indices = @transform_4, window_bounds = array<i64: 1, 128>}, {transform_indices = @transform_5, window_bounds = array<i64: 16, 128>}]} {
    %c0_i32 = arith.constant 0 : i32
    %0 = arith.cmpi eq, %arg1, %c0_i32 : i32
    %1 = arith.extui %0 : i1 to i32
    %c0_i32_0 = arith.constant 0 : i32
    %2 = arith.cmpi ne, %1, %c0_i32_0 : i32
    scf.if %2 {
      %cst_16 = arith.constant 0.000000e+00 : f32
      %20 = vector.broadcast %cst_16 : f32 to vector<16x128xf32>
      %c0_17 = arith.constant 0 : index
      %c0_18 = arith.constant 0 : index
      %21 = vector.load %arg8[%c0_17, %c0_18] : memref<16x128xf32, #tpu.memory_space<vmem>>, vector<16x128xf32>
      tpu.vector_store %arg8[%c0_17, %c0_18], %20 {strides = array<i32>} : memref<16x128xf32, #tpu.memory_space<vmem>>, vector<16x128xf32>,
    } else {
    }
    %c0 = arith.constant 0 : index
    %c0_1 = arith.constant 0 : index
    %3 = vector.load %arg2[%c0, %c0_1] : memref<16x128xbf16, #tpu.memory_space<vmem>>, vector<16x128xbf16>
    %c0_2 = arith.constant 0 : index
    %c0_3 = arith.constant 0 : index
    %4 = vector.load %arg3[%c0_2, %c0_3] : memref<128x128xbf16, #tpu.memory_space<vmem>>, vector<128x128xbf16>
    %cst = arith.constant dense<0.000000e+00> : vector<16x128xf32>
    %5 = tpu.matmul %3, %4, %cst {dimension_numbers = #tpu.dot_dimension_numbers<[1], [0], [0], [1], [0, 0, 1, 1], [], []>} : vector<16x128xbf16>, vector<128x128xbf16>, vector<16x128xf32> -> vector<16x128xf32>
    %c0_4 = arith.constant 0 : index
    %c0_5 = arith.constant 0 : index
    %6 = vector.load %arg4[%c0_4, %c0_5] : memref<1x128xf32, #tpu.memory_space<vmem>>, vector<1x128xf32>
    %7 = vector.broadcast %6 : vector<1x128xf32> to vector<16x128xf32>
    %8 = arith.addf %5, %7 : vector<16x128xf32>
    %cst_6 = arith.constant 0.000000e+00 : f32
    %9 = vector.broadcast %cst_6 : f32 to vector<16x128xf32>
    %10 = arith.maximumf %8, %9 : vector<16x128xf32>
    %c0_7 = arith.constant 0 : index
    %c0_8 = arith.constant 0 : index
    %11 = vector.load %arg8[%c0_7, %c0_8] : memref<16x128xf32, #tpu.memory_space<vmem>>, vector<16x128xf32>
    %12 = arith.truncf %10 : vector<16x128xf32> to vector<16x128xbf16>
    %c0_9 = arith.constant 0 : index
    %c0_10 = arith.constant 0 : index
    %13 = vector.load %arg5[%c0_9, %c0_10] : memref<128x128xbf16, #tpu.memory_space<vmem>>, vector<128x128xbf16>
    %cst_11 = arith.constant dense<0.000000e+00> : vector<16x128xf32>
    %14 = tpu.matmul %12, %13, %cst_11 {dimension_numbers = #tpu.dot_dimension_numbers<[1], [0], [0], [1], [0, 0, 1, 1], [], []>} : vector<16x128xbf16>, vector<128x128xbf16>, vector<16x128xf32> -> vector<16x128xf32>
    %15 = arith.addf %11, %14 : vector<16x128xf32>
    %c0_12 = arith.constant 0 : index
    %c0_13 = arith.constant 0 : index
    %16 = vector.load %arg8[%c0_12, %c0_13] : memref<16x128xf32, #tpu.memory_space<vmem>>, vector<16x128xf32>
    tpu.vector_store %arg8[%c0_12, %c0_13], %15 {strides = array<i32>} : memref<16x128xf32, #tpu.memory_space<vmem>>, vector<16x128xf32>,
    %c0_i32_14 = arith.constant 0 : i32
    %17 = arith.cmpi eq, %arg1, %c0_i32_14 : i32
    %18 = arith.extui %17 : i1 to i32
    %c0_i32_15 = arith.constant 0 : i32
    %19 = arith.cmpi ne, %18, %c0_i32_15 : i32
    scf.if %19 {
      %c0_16 = arith.constant 0 : index
      %c0_17 = arith.constant 0 : index
      %20 = vector.load %arg8[%c0_16, %c0_17] : memref<16x128xf32, #tpu.memory_space<vmem>>, vector<16x128xf32>
      %c0_18 = arith.constant 0 : index
      %c0_19 = arith.constant 0 : index
      %21 = vector.load %arg6[%c0_18, %c0_19] : memref<1x128xf32, #tpu.memory_space<vmem>>, vector<1x128xf32>
      %22 = vector.broadcast %21 : vector<1x128xf32> to vector<16x128xf32>
      %23 = arith.addf %20, %22 : vector<16x128xf32>
      %cst_20 = arith.constant 0.000000e+00 : f32
      %24 = vector.broadcast %cst_20 : f32 to vector<16x128xf32>
      %25 = arith.subf %24, %23 : vector<16x128xf32>
      %26 = math.exp %25 : vector<16x128xf32>
      %cst_21 = arith.constant 1.000000e+00 : f32
      %27 = vector.broadcast %cst_21 : f32 to vector<16x128xf32>
      %28 = arith.addf %27, %26 : vector<16x128xf32>
      %cst_22 = arith.constant 1.000000e+00 : f32
      %29 = vector.broadcast %cst_22 : f32 to vector<16x128xf32>
      %30 = arith.divf %29, %28 : vector<16x128xf32>
      %c0_23 = arith.constant 0 : index
      %c0_24 = arith.constant 0 : index
      %31 = vector.load %arg7[%c0_23, %c0_24] : memref<16x128xf32, #tpu.memory_space<vmem>>, vector<16x128xf32>
      tpu.vector_store %arg7[%c0_23, %c0_24], %30 {strides = array<i32>} : memref<16x128xf32, #tpu.memory_space<vmem>>, vector<16x128xf32>,
    } else {
    }
    return
  }
  func.func @transform_0(%arg0: i32, %arg1: i32) -> (i32, i32) {
    %c0_i32 = arith.constant 0 : i32
    %c0_i32_0 = arith.constant 0 : i32
    return %arg0, %c0_i32 : i32, i32
  }
  func.func @transform_1(%arg0: i32, %arg1: i32) -> (i32, i32) {
    %c0_i32 = arith.constant 0 : i32
    %c0_i32_0 = arith.constant 0 : i32
    return %c0_i32, %arg1 : i32, i32
  }
  func.func @transform_2(%arg0: i32, %arg1: i32) -> (i32, i32) {
    %c0_i32 = arith.constant 0 : i32
    %c0_i32_0 = arith.constant 0 : i32
    return %c0_i32, %arg1 : i32, i32
  }
  func.func @transform_3(%arg0: i32, %arg1: i32) -> (i32, i32) {
    %c0_i32 = arith.constant 0 : i32
    %c0_i32_0 = arith.constant 0 : i32
    return %arg1, %c0_i32 : i32, i32
  }
  func.func @transform_4(%arg0: i32, %arg1: i32) -> (i32, i32) {
    %c0_i32 = arith.constant 0 : i32
    %c0_i32_0 = arith.constant 0 : i32
    %c0_i32_1 = arith.constant 0 : i32
    return %c0_i32, %c0_i32_0 : i32, i32
  }
  func.func @transform_5(%arg0: i32, %arg1: i32) -> (i32, i32) {
    %c0_i32 = arith.constant 0 : i32
    %c0_i32_0 = arith.constant 0 : i32
    return %arg0, %c0_i32 : i32, i32
  }
}

</mosaic_0001>

<llo_original>
// kernel: etanet_forward.1
$region0: #{etanet_forward.1}
  #allocation0 [shape = 'u32[]', space=smem, size = 0x4, offset = 0x4, fixed_abs, tag = 'smem constant byte address 0x4 - core index']
  #allocation1 [shape = 'u32[72,128]{1,0:T(1,128)}', space=vmem, size = 0x9000, scoped, tag = 'internal scratch']
  #allocation2 [shape = 'f32[16,128]{1,0:T(8,128)}', space=vmem, size = 0x2000, scoped, tag = 'scratch operand']
  %s0 = inlined_call_operand.vmem [shape: bf16[16,128], index: 0, kind: input, shape index: {}]
  %s1 = inlined_call_operand.hbm [shape: bf16[128,128], index: 1, kind: input, shape index: {}]
  %s2 = inlined_call_operand.vmem [shape: f32[1,128], index: 2, kind: input, shape index: {}]
  %s3 = inlined_call_operand.hbm [shape: bf16[128,128], index: 3, kind: input, shape index: {}]
  %s4 = inlined_call_operand.vmem [shape: f32[1,128], index: 4, kind: input, shape index: {}]
  %s5 = inlined_call_operand.hbm [shape: f32[16,128], index: 5, kind: output, shape index: {}]
  %s6 = sld [smem:[#allocation0]]
  $region46: #{etanet_forward.1} parent=0
    _
  %s8 = ssub.s32 1, %s6
  %s9 = scalar_select 0, %s8, %s6
  $region1: #{etanet_forward.1} parent=0
    #allocation3 [shape = 'u8[32768]{0}', space=vmem, size = 0x8000, scoped, tag = 'input window, operand 1, single buffered']
    #allocation4 [shape = 's32[1]{0}', space=sflag, size = 0x4, scoped, tag = 'scoped memory for etanet_forward.1']
    #allocation5 [shape = 's32[1]{0}', space=sflag, size = 0x4, scoped, tag = 'scoped memory for etanet_forward.1']
    #allocation6 [shape = 'u8[32768]{0}', space=vmem, size = 0x8000, scoped, tag = 'input window, operand 3, single buffered']
    #allocation7 [shape = 's32[1]{0}', space=sflag, size = 0x4, scoped, tag = 'scoped memory for etanet_forward.1']
    #allocation8 [shape = 'u8[8192]{0}', space=vmem, size = 0x2000, scoped, tag = 'output window, operand 0, single buffered']
    %10 = vsyncpa [#allocation4], 0
    %11 = vsyncpa [#allocation7], 0
    %12 = vsyncpa [#allocation5], 0
    // Predicated region
    $region2: #{etanet_forward.1} parent=1 // pred_check
      _
    $region3: #{etanet_forward.1} parent=1 // pred_check_branch
      %14 = sbr.rel (0) target = $region5
    $region4: #{etanet_forward.1} parent=1 // pred_region
      _
    $region5: #{etanet_forward.1} parent=1 // pred_fallthru
      _
    // Predicated region
    $region6: #{etanet_forward.1} parent=1 // pred_check
      _
    $region7: #{etanet_forward.1} parent=1 // pred_check_branch
      %16 = sbr.rel (0) target = $region9
    $region8: #{etanet_forward.1} parent=1 // pred_region
      %18 = vsyncadd [#allocation4], 0
      %s19 = sshll.u32 %s1, 4
      %s20 = int_to_ptr.hbm [resolvable:$true] %s19
      %s21 = sshll.u32 [#allocation3], 4
      %s22 = int_to_ptr.vmem [resolvable:$true] %s21
      %27 = dma.hbm_to_vmem [thread:$0]  %s20, 1024, %s22, [#allocation4], 64, 64, 4
    $region9: #{etanet_forward.1} parent=1 // pred_fallthru
      _
    // Predicated region
    $region10: #{etanet_forward.1} parent=1 // pred_check
      _
    $region11: #{etanet_forward.1} parent=1 // pred_check_branch
      %29 = sbr.rel (0) target = $region13
    $region12: #{etanet_forward.1} parent=1 // pred_region
      _
    $region13: #{etanet_forward.1} parent=1 // pred_fallthru
      _
    // Predicated region
    $region14: #{etanet_forward.1} parent=1 // pred_check
      _
    $region15: #{etanet_forward.1} parent=1 // pred_check_branch
      %31 = sbr.rel (0) target = $region17
    $region16: #{etanet_forward.1} parent=1 // pred_region
      %33 = vsyncadd [#allocation7], 0
      %s34 = sshll.u32 %s3, 4
      %s35 = int_to_ptr.hbm [resolvable:$true] %s34
      %s36 = sshll.u32 [#allocation6], 4
      %s37 = int_to_ptr.vmem [resolvable:$true] %s36
      %42 = dma.hbm_to_vmem [thread:$0]  %s35, 1024, %s37, [#allocation7], 64, 64, 4
    $region17: #{etanet_forward.1} parent=1 // pred_fallthru
      _
    // Predicated region
    $region18: #{etanet_forward.1} parent=1 // pred_check
      _
    $region19: #{etanet_forward.1} parent=1 // pred_check_branch
      %44 = sbr.rel (0) target = $region21
    $region20: #{etanet_forward.1} parent=1 // pred_region
      _
    $region21: #{etanet_forward.1} parent=1 // pred_fallthru
      _
    // Predicated region
    $region22: #{etanet_forward.1} parent=1 // pred_check
      _
    $region23: #{etanet_forward.1} parent=1 // pred_check_branch
      %46 = sbr.rel (0) target = $region25
    $region24: #{etanet_forward.1} parent=1 // pred_region
      %48 = dma.done [#allocation4], 1024
    $region25: #{etanet_forward.1} parent=1 // pred_fallthru
      _
    // Predicated region
    $region26: #{etanet_forward.1} parent=1 // pred_check
      _
    $region27: #{etanet_forward.1} parent=1 // pred_check_branch
      %50 = sbr.rel (0) target = $region29
    $region28: #{etanet_forward.1} parent=1 // pred_region
      %52 = dma.done [#allocation7], 1024
    $region29: #{etanet_forward.1} parent=1 // pred_fallthru
      _
    %p53 = scmp.eq.s32.totalorder 0, 0
    // Predicated region
    $region30: #{etanet_forward.1} parent=1 // pred_check
      %p54 = pneg %p53
    $region31: #{etanet_forward.1} parent=1 // pred_check_branch
      %56 = sbr.rel (%p54) target = $region33
    $region32: #{etanet_forward.1} parent=1 // pred_region
      %57 = vst [vmem:[#allocation2] sm:$0xff] 0.0
      %58 = vst [vmem:[#allocation2 + $0x8] sm:$0xff] 0.0
    $region33: #{etanet_forward.1} parent=1 // pred_fallthru
      _
    %v59 = vld [vmem:[%s0] sm:$0xf]
    %v60 = vld [vmem:[%s0 + $0x4] sm:$0xf]
    %v61 = vld [vmem:[#allocation3] sm:$0xf]
    %v62 = vld [vmem:[#allocation3 + $0x4] sm:$0xf]
    %v63 = vld [vmem:[#allocation3 + $0x8] sm:$0xf]
    %v64 = vld [vmem:[#allocation3 + $0xc] sm:$0xf]
    %v65 = vld [vmem:[#allocation3 + $0x10] sm:$0xf]
    %v66 = vld [vmem:[#allocation3 + $0x14] sm:$0xf]
    %v67 = vld [vmem:[#allocation3 + $0x18] sm:$0xf]
    %v68 = vld [vmem:[#allocation3 + $0x1c] sm:$0xf]
    %v69 = vld [vmem:[#allocation3 + $0x20] sm:$0xf]
    %v70 = vld [vmem:[#allocation3 + $0x24] sm:$0xf]
    %v71 = vld [vmem:[#allocation3 + $0x28] sm:$0xf]
    %v72 = vld [vmem:[#allocation3 + $0x2c] sm:$0xf]
    %v73 = vld [vmem:[#allocation3 + $0x30] sm:$0xf]
    %v74 = vld [vmem:[#allocation3 + $0x34] sm:$0xf]
    %v75 = vld [vmem:[#allocation3 + $0x38] sm:$0xf]
    %v76 = vld [vmem:[#allocation3 + $0x3c] sm:$0xf]
    %v77 = vld [vmem:[%s2] sm:$0x1]
    %v79 = vperm.slane %v77, 0
    %v83 = vunpack.c.l.b16 %v59
    %v84 = vunpack.c.l.b16 %v60
    %v85 = vpack.c.b16 %v84, %v83
    %v103 = vunpack.c.l.b16 %v61
    %v104 = vunpack.c.l.b16 %v62
    %v105 = vunpack.c.l.b16 %v63
    %v106 = vunpack.c.l.b16 %v64
    %v107 = vunpack.c.l.b16 %v65
    %v108 = vunpack.c.l.b16 %v66
    %v109 = vunpack.c.l.b16 %v67
    %v110 = vunpack.c.l.b16 %v68
    %v111 = vunpack.c.l.b16 %v69
    %v112 = vunpack.c.l.b16 %v70
    %v113 = vunpack.c.l.b16 %v71
    %v114 = vunpack.c.l.b16 %v72
    %v115 = vunpack.c.l.b16 %v73
    %v116 = vunpack.c.l.b16 %v74
    %v117 = vunpack.c.l.b16 %v75
    %v118 = vunpack.c.l.b16 %v76
    %v119 = vpack.c.b16 %v104, %v103
    %v120 = vpack.c.b16 %v106, %v105
    %v121 = vpack.c.b16 %v108, %v107
    %v122 = vpack.c.b16 %v110, %v109
    %v123 = vpack.c.b16 %v112, %v111
    %v124 = vpack.c.b16 %v114, %v113
    %v125 = vpack.c.b16 %v116, %v115
    %v126 = vpack.c.b16 %v118, %v117
    %135 = vmatpush.bf16.msra.mxu0 %v126
    %136 = vmatpush.bf16.msra.mxu0 %v125
    %137 = vmatpush.bf16.msra.mxu0 %v124
    %138 = vmatpush.bf16.msra.mxu0 %v123
    %139 = vmatpush.bf16.msra.mxu0 %v122
    %140 = vmatpush.bf16.msra.mxu0 %v121
    %141 = vmatpush.bf16.msra.mxu0 %v120
    %142 = vmatpush.bf16.msra.mxu0 %v119
    %143 = vmatmul.bf16.gmra.mxu0 %v85
    %v144 = vpop.f32.mrf.mxu0
    %v145 = vadd.f32 %v79, %v144
    %v146 = vpop.f32.mrf.mxu0
    %v147 = vadd.f32 %v79, %v146
    %148 = vdwg.mxu0
    %v149 = vmax.f32 %v145, 0.0
    %v150 = vmax.f32 %v147, 0.0
    %v151 = vld [vmem:[#allocation2] sm:$0xff]
    %v152 = vld [vmem:[#allocation2 + $0x8] sm:$0xff]
    %v153 = vpack.c.bf16 %v150, %v149
    %v154 = vld [vmem:[#allocation6] sm:$0xf]
    %v155 = vld [vmem:[#allocation6 + $0x4] sm:$0xf]
    %v156 = vld [vmem:[#allocation6 + $0x8] sm:$0xf]
    %v157 = vld [vmem:[#allocation6 + $0xc] sm:$0xf]
    %v158 = vld [vmem:[#allocation6 + $0x10] sm:$0xf]
    %v159 = vld [vmem:[#allocation6 + $0x14] sm:$0xf]
    %v160 = vld [vmem:[#allocation6 + $0x18] sm:$0xf]
    %v161 = vld [vmem:[#allocation6 + $0x1c] sm:$0xf]
    %v162 = vld [vmem:[#allocation6 + $0x20] sm:$0xf]
    %v163 = vld [vmem:[#allocation6 + $0x24] sm:$0xf]
    %v164 = vld [vmem:[#allocation6 + $0x28] sm:$0xf]
    %v165 = vld [vmem:[#allocation6 + $0x2c] sm:$0xf]
    %v166 = vld [vmem:[#allocation6 + $0x30] sm:$0xf]
    %v167 = vld [vmem:[#allocation6 + $0x34] sm:$0xf]
    %v168 = vld [vmem:[#allocation6 + $0x38] sm:$0xf]
    %v169 = vld [vmem:[#allocation6 + $0x3c] sm:$0xf]
    %v186 = vunpack.c.l.b16 %v154
    %v187 = vunpack.c.l.b16 %v155
    %v188 = vunpack.c.l.b16 %v156
    %v189 = vunpack.c.l.b16 %v157
    %v190 = vunpack.c.l.b16 %v158
    %v191 = vunpack.c.l.b16 %v159
    %v192 = vunpack.c.l.b16 %v160
    %v193 = vunpack.c.l.b16 %v161
    %v194 = vunpack.c.l.b16 %v162
    %v195 = vunpack.c.l.b16 %v163
    %v196 = vunpack.c.l.b16 %v164
    %v197 = vunpack.c.l.b16 %v165
    %v198 = vunpack.c.l.b16 %v166
    %v199 = vunpack.c.l.b16 %v167
    %v200 = vunpack.c.l.b16 %v168
    %v201 = vunpack.c.l.b16 %v169
    %v202 = vpack.c.b16 %v187, %v186
    %v203 = vpack.c.b16 %v189, %v188
    %v204 = vpack.c.b16 %v191, %v190
    %v205 = vpack.c.b16 %v193, %v192
    %v206 = vpack.c.b16 %v195, %v194
    %v207 = vpack.c.b16 %v197, %v196
    %v208 = vpack.c.b16 %v199, %v198
    %v209 = vpack.c.b16 %v201, %v200
    %218 = vmatpush.bf16.msra.mxu0 %v209
    %219 = vmatpush.bf16.msra.mxu0 %v208
    %220 = vmatpush.bf16.msra.mxu0 %v207
    %221 = vmatpush.bf16.msra.mxu0 %v206
    %222 = vmatpush.bf16.msra.mxu0 %v205
    %223 = vmatpush.bf16.msra.mxu0 %v204
    %224 = vmatpush.bf16.msra.mxu0 %v203
    %225 = vmatpush.bf16.msra.mxu0 %v202
    %226 = vmatmul.bf16.gmra.mxu0 %v153
    %v227 = vpop.f32.mrf.mxu0
    %v228 = vadd.f32 0.0, %v227
    %v229 = vpop.f32.mrf.mxu0
    %v230 = vadd.f32 0.0, %v229
    %231 = vdwg.mxu0
    %v232 = vadd.f32 %v151, %v228
    %v233 = vadd.f32 %v152, %v230
    %234 = vst [vmem:[#allocation2] sm:$0xff] %v232
    %235 = vst [vmem:[#allocation2 + $0x8] sm:$0xff] %v233
    // Predicated region
    $region34: #{etanet_forward.1} parent=1 // pred_check
      %p236 = pneg %p53
    $region35: #{etanet_forward.1} parent=1 // pred_check_branch
      %238 = sbr.rel (%p236) target = $region37
    $region36: #{etanet_forward.1} parent=1 // pred_region
      %v239 = vld [vmem:[#allocation2] sm:$0xff]
      %v240 = vld [vmem:[#allocation2 + $0x8] sm:$0xff]
      %v241 = vld [vmem:[%s4] sm:$0x1]
      %v243 = vperm.slane %v241, 0
      %v245 = vadd.f32 %v239, %v243
      %v246 = vadd.f32 %v240, %v243
      %v247 = vsub.f32 0.0, %v245
      %v248 = vsub.f32 0.0, %v246
      %v249 = vmul.f32 %v247, 1.442695
      %v250 = vpow.pop %v249
      %v251 = vmul.f32 %v248, 1.442695
      %v252 = vpow.pop %v251
      %v253 = vadd.f32 %v250, 1.0
      %v254 = vadd.f32 %v252, 1.0
      %v255 = vrcp.pop %v253
      %v256 = vmul.f32 %v253, %v255
      %v257 = vsub.f32 1.0, %v256
      %v258 = vmul.f32 %v255, %v257
      %v259 = vadd.f32 %v255, %v258
      %vm260 = vweird.f32 %v253
      %vm261 = vweird.f32 %v255
      %vm262 = vmor %vm260, %vm261
      %v263 = vsel %vm262, %v255, %v259
      %v264 = vand.u32 2147483647, %v253
      %vm265 = vcmp.eq.f32.partialorder %v264, 8.507059e+37
      %v266 = vand.u32 %v253, 2147483648
      %v267 = vor.u32 1.1754944e-38, %v266
      %v268 = vsel %vm265, %v267, %v263
      %v269 = vmul.f32 1.0, %v268
      %v270 = vrcp.pop %v254
      %v271 = vmul.f32 %v254, %v270
      %v272 = vsub.f32 1.0, %v271
      %v273 = vmul.f32 %v270, %v272
      %v274 = vadd.f32 %v270, %v273
      %vm275 = vweird.f32 %v254
      %vm276 = vweird.f32 %v270
      %vm277 = vmor %vm275, %vm276
      %v278 = vsel %vm277, %v270, %v274
      %v279 = vand.u32 2147483647, %v254
      %vm280 = vcmp.eq.f32.partialorder %v279, 8.507059e+37
      %v281 = vand.u32 %v254, 2147483648
      %v282 = vor.u32 1.1754944e-38, %v281
      %v283 = vsel %vm280, %v282, %v278
      %v284 = vmul.f32 1.0, %v283
      %285 = vst [vmem:[#allocation8] sm:$0xff] %v269
      %286 = vst [vmem:[#allocation8 + $0x8] sm:$0xff] %v284
    $region37: #{etanet_forward.1} parent=1 // pred_fallthru
      _
    // Predicated region
    $region38: #{etanet_forward.1} parent=1 // pred_check
      _
    $region39: #{etanet_forward.1} parent=1 // pred_check_branch
      %288 = sbr.rel (0) target = $region41
    $region40: #{etanet_forward.1} parent=1 // pred_region
      %290 = vsyncadd [#allocation5], 0
      %s291 = sshll.u32 [#allocation8], 4
      %s292 = int_to_ptr.vmem [resolvable:$true] %s291
      %s293 = sshll.u32 %s5, 4
      %s294 = int_to_ptr.hbm [resolvable:$true] %s293
      %299 = dma.vmem_to_hbm [thread:$0]  %s292, 256, %s294, [#allocation5], 128, 128, 8
    $region41: #{etanet_forward.1} parent=1 // pred_fallthru
      _
    // Predicated region
    $region42: #{etanet_forward.1} parent=1 // pred_check
      _
    $region43: #{etanet_forward.1} parent=1 // pred_check_branch
      %301 = sbr.rel (0) target = $region45
    $region44: #{etanet_forward.1} parent=1 // pred_region
      %303 = dma.done [#allocation5], 256
    $region45: #{etanet_forward.1} parent=1 // pred_fallthru
      _
    %304 = vsyncpa [#allocation4], 1
    %305 = vsyncpa [#allocation7], 1
    %306 = vsyncpa [#allocation5], 1

</llo_original>
